<compile_context>
chip_gen: v5e
topology: v5e:2x2
jax: 0.10.0
libtpu: 0.0.40
codegen_flags: <defaults>
</compile_context>

<pallas_src>
import functools

import jax
import jax.numpy as jnp
from jax import lax
from jax.experimental import pallas as pl
from jax.experimental.pallas import tpu as pltpu

BN_EPS = 1e-5   # torch.nn.BatchNorm1d default eps
GN_EPS = 1e-5   # torch_geometric.nn.GraphNorm default eps


def _layer(h_in, adj_bd, w_rel, w_root, v, B, N):
    """One GNN block on flat features.

    h_in:   [B*N, C] f32
    adj_bd: [B*N, B*N] bf16 block-diagonal adjacency
    w_rel:  [C, C] bf16, w_root: [C, C] bf16
    v:      [8, C] f32 rows: 0=b_rel, 1=bn_w, 2=bn_b, 3=gn_w, 4=gn_b, 5=gn_mean_scale
    """
    rows = B * N
    hb = h_in.astype(jnp.bfloat16)

    # --- DenseGraphConv (aggr='add', mask=None): lin_rel(adj @ x) + lin_root(x) + b_rel ---
    agg = jnp.dot(adj_bd, hb, preferred_element_type=jnp.float32)            # [B*N, C]
    h = (jnp.dot(agg.astype(jnp.bfloat16), w_rel, preferred_element_type=jnp.float32)
         + jnp.dot(hb, w_root, preferred_element_type=jnp.float32)
         + v[0:1, :])

    # --- ReLU ---
    h = jnp.maximum(h, 0.0)

    # --- BatchNorm1d over the flattened (B*N, C) rows: training-mode batch stats (biased var),
    #     one-pass statistics, affine folded into scale/shift ---
    inv_rows = 1.0 / rows
    mean_bn = jnp.sum(h, axis=0, keepdims=True) * inv_rows
    msq_bn = jnp.sum(h * h, axis=0, keepdims=True) * inv_rows
    var_bn = msq_bn - mean_bn * mean_bn
    scale_bn = v[1:2, :] * lax.rsqrt(var_bn + BN_EPS)                        # bn_w folded
    h = h * scale_bn + (v[2:3, :] - mean_bn * scale_bn)                      # bn_b folded

    # --- GraphNorm (batch=None on a 3-D input => stats over the B graphs per (node, channel)),
    #     computed on the flat [B*N, C] layout with static sublane slices (no 3-D reshape) ---
    gn_w, gn_b, gn_ms = v[3:4, :], v[4:5, :], v[5:6, :]
    blocks = [h[b * N:(b + 1) * N, :] for b in range(B)]                     # [N, C] views
    mean_gn = blocks[0]
    for b in range(1, B):
        mean_gn = mean_gn + blocks[b]
    mean_gn = mean_gn * (1.0 / B)
    shift = mean_gn * gn_ms
    centered = [blk - shift for blk in blocks]
    var_gn = centered[0] * centered[0]
    for b in range(1, B):
        var_gn = var_gn + centered[b] * centered[b]
    var_gn = var_gn * (1.0 / B)
    scale_gn = gn_w * lax.rsqrt(var_gn + GN_EPS)                             # gn_w folded
    out_blocks = [c * scale_gn + gn_b for c in centered]

    # --- Dropout: nn.Dropout() at inference is identity ---
    # TODO(synk): training-mode dropout (p=0.5) would need in-kernel RNG; eval semantics used.
    return jnp.concatenate(out_blocks, axis=0)                               # [B*N, C]


def gnn3_kernel(adj_ref, x_ref, w_ref, v_ref, out_ref, *, B, N):
    adj_bd = adj_ref[...]                      # bf16, loaded once, reused by all 3 layers
    x0 = x_ref[...]                            # f32 [B*N, C]
    x1 = _layer(x0, adj_bd, w_ref[0], w_ref[1], v_ref[0], B, N)
    x2 = _layer(x1, adj_bd, w_ref[2], w_ref[3], v_ref[1], B, N)
    x3 = _layer(x2, adj_bd, w_ref[4], w_ref[5], v_ref[2], B, N)
    out_ref[...] = x3.astype(out_ref.dtype)


def gnn_forward(x, adj, params):
    B, N, c_in = x.shape
    c_outs = [p['w_rel'].shape[1] for p in params]
    cmax = max([c_in] + c_outs)                # 32 for the example sizes
    BN = B * N

    # Block-diagonal adjacency in bf16 ({0,1} is exact): one 2-D matmul aggregates all graphs.
    # Note adj_bd scales as (B*N)^2 — fine at this size (2 KiB).
    adj_bd = jnp.zeros((BN, BN), jnp.bfloat16)
    for b in range(B):
        adj_bd = adj_bd.at[b * N:(b + 1) * N, b * N:(b + 1) * N].set(adj[b].astype(jnp.bfloat16))

    # Flat node features, channel-padded to cmax lanes (padded channels are exactly zero).
    x_flat = jnp.zeros((BN, cmax), jnp.float32).at[:, :c_in].set(x.reshape(BN, c_in))

    # Pack the six weight matrices into one bf16 blob and the per-channel vectors into one f32
    # blob -> 4 input DMAs instead of 8.
    w_blob = jnp.zeros((2 * len(params), cmax, cmax), jnp.bfloat16)
    v_blob = jnp.zeros((len(params), 8, cmax), jnp.float32)
    for i, p in enumerate(params):
        ci, co = p['w_rel'].shape
        w_blob = w_blob.at[2 * i, :ci, :co].set(p['w_rel'].astype(jnp.bfloat16))
        w_blob = w_blob.at[2 * i + 1, :ci, :co].set(p['w_root'].astype(jnp.bfloat16))
        v_blob = v_blob.at[i, :, :co].set(p['vecs'])

    vmem = pl.BlockSpec(memory_space=pltpu.MemorySpace.VMEM)   # whole array resident in VMEM
    out_flat = pl.pallas_call(
        functools.partial(gnn3_kernel, B=B, N=N),
        out_shape=jax.ShapeDtypeStruct((BN, cmax), jnp.float32),
        in_specs=[vmem, vmem, vmem, vmem],
        out_specs=vmem,
    )(adj_bd, x_flat, w_blob, v_blob)

    c_out = c_outs[-1]
    return out_flat[:, :c_out].reshape(B, N, c_out)


def init_layer_params(key, c_in, c_out):
    """Matches PyG DenseGraphConv / BatchNorm / GraphNorm default init."""
    k1, k2, k3 = jax.random.split(key, 3)
    bound = 1.0 / jnp.sqrt(jnp.float32(c_in))
    w_rel = jax.random.uniform(k1, (c_in, c_out), jnp.float32, -bound, bound)   # lin_rel (bias)
    b_rel = jax.random.uniform(k2, (c_out,), jnp.float32, -bound, bound)
    w_root = jax.random.uniform(k3, (c_in, c_out), jnp.float32, -bound, bound)  # lin_root (no bias)

    # Per-channel vectors packed into one [8, c_out] array (rows 6-7 are sublane padding):
    #   0: b_rel, 1: bn_w, 2: bn_b, 3: gn_w, 4: gn_b, 5: gn_mean_scale
    vecs = jnp.zeros((8, c_out), jnp.float32)
    vecs = vecs.at[0].set(b_rel)
    vecs = vecs.at[1].set(1.0)   # BatchNorm weight (default init)
    vecs = vecs.at[3].set(1.0)   # GraphNorm weight
    vecs = vecs.at[5].set(1.0)   # GraphNorm mean_scale
    return {'w_rel': w_rel, 'w_root': w_root, 'vecs': vecs}


if __name__ == "__main__":
    B, N = 2, 16
    in_channels, hidden1, hidden2, out_channels = 8, 32, 32, 16

    key = jax.random.PRNGKey(0)
    kx, ka, k1, k2, k3 = jax.random.split(key, 5)

    x = jax.random.normal(kx, (B, N, in_channels), jnp.float32)
    adj = (jax.random.uniform(ka, (B, N, N)) < 0.3).astype(jnp.float32)

    params = [
        init_layer_params(k1, in_channels, hidden1),
        init_layer_params(k2, hidden1, hidden2),
        init_layer_params(k3, hidden2, out_channels),
    ]

    out = jax.jit(gnn_forward)(x, adj, params)
    jax.block_until_ready(out)
    assert out.shape == (B, N, out_channels)
    assert bool(jnp.all(jnp.isfinite(out)))
    print("KERNEL_OK")
</pallas_src>

<mosaic_0001>
module attributes {stable_mosaic.version = 11 : i64} {
  func.func @gnn3_kernel(%arg0: memref<32x32xbf16, #tpu.memory_space<vmem>>, %arg1: memref<32x32xf32, #tpu.memory_space<vmem>>, %arg2: memref<6x32x32xbf16, #tpu.memory_space<vmem>>, %arg3: memref<3x8x32xf32, #tpu.memory_space<vmem>>, %arg4: memref<32x32xf32, #tpu.memory_space<vmem>>) attributes {dimension_semantics = [], scalar_prefetch = 0 : i64, scratch_operands = 0 : i64, tpu.core_type = #tpu.core_type<tc>} {
    %c0 = arith.constant 0 : index
    %c0_0 = arith.constant 0 : index
    %0 = vector.load %arg0[%c0, %c0_0] : memref<32x32xbf16, #tpu.memory_space<vmem>>, vector<32x32xbf16>
    %c0_1 = arith.constant 0 : index
    %c0_2 = arith.constant 0 : index
    %1 = vector.load %arg1[%c0_1, %c0_2] : memref<32x32xf32, #tpu.memory_space<vmem>>, vector<32x32xf32>
    %c0_3 = arith.constant 0 : index
    %c0_4 = arith.constant 0 : index
    %c0_5 = arith.constant 0 : index
    %2 = vector.load %arg2[%c0_3, %c0_4, %c0_5] : memref<6x32x32xbf16, #tpu.memory_space<vmem>>, vector<1x32x32xbf16>
    %3 = vector.shape_cast %2 : vector<1x32x32xbf16> to vector<32x32xbf16>
    %c1 = arith.constant 1 : index
    %c0_6 = arith.constant 0 : index
    %c0_7 = arith.constant 0 : index
    %4 = vector.load %arg2[%c1, %c0_6, %c0_7] : memref<6x32x32xbf16, #tpu.memory_space<vmem>>, vector<1x32x32xbf16>
    %5 = vector.shape_cast %4 : vector<1x32x32xbf16> to vector<32x32xbf16>
    %c0_8 = arith.constant 0 : index
    %c0_9 = arith.constant 0 : index
    %c0_10 = arith.constant 0 : index
    %6 = vector.load %arg3[%c0_8, %c0_9, %c0_10] : memref<3x8x32xf32, #tpu.memory_space<vmem>>, vector<1x8x32xf32>
    %7 = vector.shape_cast %6 : vector<1x8x32xf32> to vector<8x32xf32>
    %8 = arith.truncf %1 : vector<32x32xf32> to vector<32x32xbf16>
    %cst = arith.constant dense<0.000000e+00> : vector<32x32xf32>
    %9 = tpu.matmul %0, %8, %cst {dimension_numbers = #tpu.dot_dimension_numbers<[1], [0], [0], [1], [0, 0, 1, 1], [], []>} : vector<32x32xbf16>, vector<32x32xbf16>, vector<32x32xf32> -> vector<32x32xf32>
    %10 = arith.truncf %9 : vector<32x32xf32> to vector<32x32xbf16>
    %cst_11 = arith.constant dense<0.000000e+00> : vector<32x32xf32>
    %11 = tpu.matmul %10, %3, %cst_11 {dimension_numbers = #tpu.dot_dimension_numbers<[1], [0], [0], [1], [0, 0, 1, 1], [], []>} : vector<32x32xbf16>, vector<32x32xbf16>, vector<32x32xf32> -> vector<32x32xf32>
    %cst_12 = arith.constant dense<0.000000e+00> : vector<32x32xf32>
    %12 = tpu.matmul %8, %5, %cst_12 {dimension_numbers = #tpu.dot_dimension_numbers<[1], [0], [0], [1], [0, 0, 1, 1], [], []>} : vector<32x32xbf16>, vector<32x32xbf16>, vector<32x32xf32> -> vector<32x32xf32>
    %13 = arith.addf %11, %12 : vector<32x32xf32>
    %14 = vector.extract_strided_slice %7 {offsets = [0, 0], sizes = [1, 32], strides = [1, 1]} : vector<8x32xf32> to vector<1x32xf32>
    %15 = vector.broadcast %14 : vector<1x32xf32> to vector<32x32xf32>
    %16 = arith.addf %13, %15 : vector<32x32xf32>
    %cst_13 = arith.constant 0.000000e+00 : f32
    %17 = vector.broadcast %cst_13 : f32 to vector<32x32xf32>
    %18 = arith.maximumf %16, %17 : vector<32x32xf32>
    %cst_14 = arith.constant dense<0.000000e+00> : vector<32xf32>
    %19 = vector.multi_reduction <add>, %18, %cst_14 [0] : vector<32x32xf32> to vector<32xf32>
    %20 = vector.shape_cast %19 : vector<32xf32> to vector<1x32xf32>
    %cst_15 = arith.constant 3.125000e-02 : f32
    %21 = vector.broadcast %cst_15 : f32 to vector<1x32xf32>
    %22 = arith.mulf %20, %21 : vector<1x32xf32>
    %23 = arith.mulf %18, %18 : vector<32x32xf32>
    %cst_16 = arith.constant dense<0.000000e+00> : vector<32xf32>
    %24 = vector.multi_reduction <add>, %23, %cst_16 [0] : vector<32x32xf32> to vector<32xf32>
    %25 = vector.shape_cast %24 : vector<32xf32> to vector<1x32xf32>
    %cst_17 = arith.constant 3.125000e-02 : f32
    %26 = vector.broadcast %cst_17 : f32 to vector<1x32xf32>
    %27 = arith.mulf %25, %26 : vector<1x32xf32>
    %28 = arith.mulf %22, %22 : vector<1x32xf32>
    %29 = arith.subf %27, %28 : vector<1x32xf32>
    %30 = vector.extract_strided_slice %7 {offsets = [1, 0], sizes = [1, 32], strides = [1, 1]} : vector<8x32xf32> to vector<1x32xf32>
    %cst_18 = arith.constant 9.99999974E-6 : f32
    %31 = vector.broadcast %cst_18 : f32 to vector<1x32xf32>
    %32 = arith.addf %29, %31 : vector<1x32xf32>
    %33 = math.rsqrt %32 : vector<1x32xf32>
    %34 = arith.mulf %30, %33 : vector<1x32xf32>
    %35 = vector.broadcast %34 : vector<1x32xf32> to vector<32x32xf32>
    %36 = arith.mulf %18, %35 : vector<32x32xf32>
    %37 = vector.extract_strided_slice %7 {offsets = [2, 0], sizes = [1, 32], strides = [1, 1]} : vector<8x32xf32> to vector<1x32xf32>
    %38 = arith.mulf %22, %34 : vector<1x32xf32>
    %39 = arith.subf %37, %38 : vector<1x32xf32>
    %40 = vector.broadcast %39 : vector<1x32xf32> to vector<32x32xf32>
    %41 = arith.addf %36, %40 : vector<32x32xf32>
    %42 = vector.extract_strided_slice %7 {offsets = [3, 0], sizes = [1, 32], strides = [1, 1]} : vector<8x32xf32> to vector<1x32xf32>
    %43 = vector.extract_strided_slice %7 {offsets = [4, 0], sizes = [1, 32], strides = [1, 1]} : vector<8x32xf32> to vector<1x32xf32>
    %44 = vector.extract_strided_slice %7 {offsets = [5, 0], sizes = [1, 32], strides = [1, 1]} : vector<8x32xf32> to vector<1x32xf32>
    %45 = vector.extract_strided_slice %41 {offsets = [0, 0], sizes = [16, 32], strides = [1, 1]} : vector<32x32xf32> to vector<16x32xf32>
    %46 = vector.extract_strided_slice %41 {offsets = [16, 0], sizes = [16, 32], strides = [1, 1]} : vector<32x32xf32> to vector<16x32xf32>
    %47 = arith.addf %45, %46 : vector<16x32xf32>
    %cst_19 = arith.constant 5.000000e-01 : f32
    %48 = vector.broadcast %cst_19 : f32 to vector<16x32xf32>
    %49 = arith.mulf %47, %48 : vector<16x32xf32>
    %50 = vector.broadcast %44 : vector<1x32xf32> to vector<16x32xf32>
    %51 = arith.mulf %49, %50 : vector<16x32xf32>
    %52 = arith.subf %45, %51 : vector<16x32xf32>
    %53 = arith.subf %46, %51 : vector<16x32xf32>
    %54 = arith.mulf %52, %52 : vector<16x32xf32>
    %55 = arith.mulf %53, %53 : vector<16x32xf32>
    %56 = arith.addf %54, %55 : vector<16x32xf32>
    %cst_20 = arith.constant 5.000000e-01 : f32
    %57 = vector.broadcast %cst_20 : f32 to vector<16x32xf32>
    %58 = arith.mulf %56, %57 : vector<16x32xf32>
    %cst_21 = arith.constant 9.99999974E-6 : f32
    %59 = vector.broadcast %cst_21 : f32 to vector<16x32xf32>
    %60 = arith.addf %58, %59 : vector<16x32xf32>
    %61 = math.rsqrt %60 : vector<16x32xf32>
    %62 = vector.broadcast %42 : vector<1x32xf32> to vector<16x32xf32>
    %63 = arith.mulf %62, %61 : vector<16x32xf32>
    %64 = arith.mulf %52, %63 : vector<16x32xf32>
    %65 = vector.broadcast %43 : vector<1x32xf32> to vector<16x32xf32>
    %66 = arith.addf %64, %65 : vector<16x32xf32>
    %67 = arith.mulf %53, %63 : vector<16x32xf32>
    %68 = vector.broadcast %43 : vector<1x32xf32> to vector<16x32xf32>
    %69 = arith.addf %67, %68 : vector<16x32xf32>
    %70 = tpu.concatenate %66, %69 in 0 : vector<16x32xf32>, vector<16x32xf32> -> vector<32x32xf32>
    %c2 = arith.constant 2 : index
    %c0_22 = arith.constant 0 : index
    %c0_23 = arith.constant 0 : index
    %71 = vector.load %arg2[%c2, %c0_22, %c0_23] : memref<6x32x32xbf16, #tpu.memory_space<vmem>>, vector<1x32x32xbf16>
    %72 = vector.shape_cast %71 : vector<1x32x32xbf16> to vector<32x32xbf16>
    %c3 = arith.constant 3 : index
    %c0_24 = arith.constant 0 : index
    %c0_25 = arith.constant 0 : index
    %73 = vector.load %arg2[%c3, %c0_24, %c0_25] : memref<6x32x32xbf16, #tpu.memory_space<vmem>>, vector<1x32x32xbf16>
    %74 = vector.shape_cast %73 : vector<1x32x32xbf16> to vector<32x32xbf16>
    %c1_26 = arith.constant 1 : index
    %c0_27 = arith.constant 0 : index
    %c0_28 = arith.constant 0 : index
    %75 = vector.load %arg3[%c1_26, %c0_27, %c0_28] : memref<3x8x32xf32, #tpu.memory_space<vmem>>, vector<1x8x32xf32>
    %76 = vector.shape_cast %75 : vector<1x8x32xf32> to vector<8x32xf32>
    %77 = arith.truncf %70 : vector<32x32xf32> to vector<32x32xbf16>
    %cst_29 = arith.constant dense<0.000000e+00> : vector<32x32xf32>
    %78 = tpu.matmul %0, %77, %cst_29 {dimension_numbers = #tpu.dot_dimension_numbers<[1], [0], [0], [1], [0, 0, 1, 1], [], []>} : vector<32x32xbf16>, vector<32x32xbf16>, vector<32x32xf32> -> vector<32x32xf32>
    %79 = arith.truncf %78 : vector<32x32xf32> to vector<32x32xbf16>
    %cst_30 = arith.constant dense<0.000000e+00> : vector<32x32xf32>
    %80 = tpu.matmul %79, %72, %cst_30 {dimension_numbers = #tpu.dot_dimension_numbers<[1], [0], [0], [1], [0, 0, 1, 1], [], []>} : vector<32x32xbf16>, vector<32x32xbf16>, vector<32x32xf32> -> vector<32x32xf32>
    %cst_31 = arith.constant dense<0.000000e+00> : vector<32x32xf32>
    %81 = tpu.matmul %77, %74, %cst_31 {dimension_numbers = #tpu.dot_dimension_numbers<[1], [0], [0], [1], [0, 0, 1, 1], [], []>} : vector<32x32xbf16>, vector<32x32xbf16>, vector<32x32xf32> -> vector<32x32xf32>
    %82 = arith.addf %80, %81 : vector<32x32xf32>
    %83 = vector.extract_strided_slice %76 {offsets = [0, 0], sizes = [1, 32], strides = [1, 1]} : vector<8x32xf32> to vector<1x32xf32>
    %84 = vector.broadcast %83 : vector<1x32xf32> to vector<32x32xf32>
    %85 = arith.addf %82, %84 : vector<32x32xf32>
    %cst_32 = arith.constant 0.000000e+00 : f32
    %86 = vector.broadcast %cst_32 : f32 to vector<32x32xf32>
    %87 = arith.maximumf %85, %86 : vector<32x32xf32>
    %cst_33 = arith.constant dense<0.000000e+00> : vector<32xf32>
    %88 = vector.multi_reduction <add>, %87, %cst_33 [0] : vector<32x32xf32> to vector<32xf32>
    %89 = vector.shape_cast %88 : vector<32xf32> to vector<1x32xf32>
    %cst_34 = arith.constant 3.125000e-02 : f32
    %90 = vector.broadcast %cst_34 : f32 to vector<1x32xf32>
    %91 = arith.mulf %89, %90 : vector<1x32xf32>
    %92 = arith.mulf %87, %87 : vector<32x32xf32>
    %cst_35 = arith.constant dense<0.000000e+00> : vector<32xf32>
    %93 = vector.multi_reduction <add>, %92, %cst_35 [0] : vector<32x32xf32> to vector<32xf32>
    %94 = vector.shape_cast %93 : vector<32xf32> to vector<1x32xf32>
    %cst_36 = arith.constant 3.125000e-02 : f32
    %95 = vector.broadcast %cst_36 : f32 to vector<1x32xf32>
    %96 = arith.mulf %94, %95 : vector<1x32xf32>
    %97 = arith.mulf %91, %91 : vector<1x32xf32>
    %98 = arith.subf %96, %97 : vector<1x32xf32>
    %99 = vector.extract_strided_slice %76 {offsets = [1, 0], sizes = [1, 32], strides = [1, 1]} : vector<8x32xf32> to vector<1x32xf32>
    %cst_37 = arith.constant 9.99999974E-6 : f32
    %100 = vector.broadcast %cst_37 : f32 to vector<1x32xf32>
    %101 = arith.addf %98, %100 : vector<1x32xf32>
    %102 = math.rsqrt %101 : vector<1x32xf32>
    %103 = arith.mulf %99, %102 : vector<1x32xf32>
    %104 = vector.broadcast %103 : vector<1x32xf32> to vector<32x32xf32>
    %105 = arith.mulf %87, %104 : vector<32x32xf32>
    %106 = vector.extract_strided_slice %76 {offsets = [2, 0], sizes = [1, 32], strides = [1, 1]} : vector<8x32xf32> to vector<1x32xf32>
    %107 = arith.mulf %91, %103 : vector<1x32xf32>
    %108 = arith.subf %106, %107 : vector<1x32xf32>
    %109 = vector.broadcast %108 : vector<1x32xf32> to vector<32x32xf32>
    %110 = arith.addf %105, %109 : vector<32x32xf32>
    %111 = vector.extract_strided_slice %76 {offsets = [3, 0], sizes = [1, 32], strides = [1, 1]} : vector<8x32xf32> to vector<1x32xf32>
    %112 = vector.extract_strided_slice %76 {offsets = [4, 0], sizes = [1, 32], strides = [1, 1]} : vector<8x32xf32> to vector<1x32xf32>
    %113 = vector.extract_strided_slice %76 {offsets = [5, 0], sizes = [1, 32], strides = [1, 1]} : vector<8x32xf32> to vector<1x32xf32>
    %114 = vector.extract_strided_slice %110 {offsets = [0, 0], sizes = [16, 32], strides = [1, 1]} : vector<32x32xf32> to vector<16x32xf32>
    %115 = vector.extract_strided_slice %110 {offsets = [16, 0], sizes = [16, 32], strides = [1, 1]} : vector<32x32xf32> to vector<16x32xf32>
    %116 = arith.addf %114, %115 : vector<16x32xf32>
    %cst_38 = arith.constant 5.000000e-01 : f32
    %117 = vector.broadcast %cst_38 : f32 to vector<16x32xf32>
    %118 = arith.mulf %116, %117 : vector<16x32xf32>
    %119 = vector.broadcast %113 : vector<1x32xf32> to vector<16x32xf32>
    %120 = arith.mulf %118, %119 : vector<16x32xf32>
    %121 = arith.subf %114, %120 : vector<16x32xf32>
    %122 = arith.subf %115, %120 : vector<16x32xf32>
    %123 = arith.mulf %121, %121 : vector<16x32xf32>
    %124 = arith.mulf %122, %122 : vector<16x32xf32>
    %125 = arith.addf %123, %124 : vector<16x32xf32>
    %cst_39 = arith.constant 5.000000e-01 : f32
    %126 = vector.broadcast %cst_39 : f32 to vector<16x32xf32>
    %127 = arith.mulf %125, %126 : vector<16x32xf32>
    %cst_40 = arith.constant 9.99999974E-6 : f32
    %128 = vector.broadcast %cst_40 : f32 to vector<16x32xf32>
    %129 = arith.addf %127, %128 : vector<16x32xf32>
    %130 = math.rsqrt %129 : vector<16x32xf32>
    %131 = vector.broadcast %111 : vector<1x32xf32> to vector<16x32xf32>
    %132 = arith.mulf %131, %130 : vector<16x32xf32>
    %133 = arith.mulf %121, %132 : vector<16x32xf32>
    %134 = vector.broadcast %112 : vector<1x32xf32> to vector<16x32xf32>
    %135 = arith.addf %133, %134 : vector<16x32xf32>
    %136 = arith.mulf %122, %132 : vector<16x32xf32>
    %137 = vector.broadcast %112 : vector<1x32xf32> to vector<16x32xf32>
    %138 = arith.addf %136, %137 : vector<16x32xf32>
    %139 = tpu.concatenate %135, %138 in 0 : vector<16x32xf32>, vector<16x32xf32> -> vector<32x32xf32>
    %c4 = arith.constant 4 : index
    %c0_41 = arith.constant 0 : index
    %c0_42 = arith.constant 0 : index
    %140 = vector.load %arg2[%c4, %c0_41, %c0_42] : memref<6x32x32xbf16, #tpu.memory_space<vmem>>, vector<1x32x32xbf16>
    %141 = vector.shape_cast %140 : vector<1x32x32xbf16> to vector<32x32xbf16>
    %c5 = arith.constant 5 : index
    %c0_43 = arith.constant 0 : index
    %c0_44 = arith.constant 0 : index
    %142 = vector.load %arg2[%c5, %c0_43, %c0_44] : memref<6x32x32xbf16, #tpu.memory_space<vmem>>, vector<1x32x32xbf16>
    %143 = vector.shape_cast %142 : vector<1x32x32xbf16> to vector<32x32xbf16>
    %c2_45 = arith.constant 2 : index
    %c0_46 = arith.constant 0 : index
    %c0_47 = arith.constant 0 : index
    %144 = vector.load %arg3[%c2_45, %c0_46, %c0_47] : memref<3x8x32xf32, #tpu.memory_space<vmem>>, vector<1x8x32xf32>
    %145 = vector.shape_cast %144 : vector<1x8x32xf32> to vector<8x32xf32>
    %146 = arith.truncf %139 : vector<32x32xf32> to vector<32x32xbf16>
    %cst_48 = arith.constant dense<0.000000e+00> : vector<32x32xf32>
    %147 = tpu.matmul %0, %146, %cst_48 {dimension_numbers = #tpu.dot_dimension_numbers<[1], [0], [0], [1], [0, 0, 1, 1], [], []>} : vector<32x32xbf16>, vector<32x32xbf16>, vector<32x32xf32> -> vector<32x32xf32>
    %148 = arith.truncf %147 : vector<32x32xf32> to vector<32x32xbf16>
    %cst_49 = arith.constant dense<0.000000e+00> : vector<32x32xf32>
    %149 = tpu.matmul %148, %141, %cst_49 {dimension_numbers = #tpu.dot_dimension_numbers<[1], [0], [0], [1], [0, 0, 1, 1], [], []>} : vector<32x32xbf16>, vector<32x32xbf16>, vector<32x32xf32> -> vector<32x32xf32>
    %cst_50 = arith.constant dense<0.000000e+00> : vector<32x32xf32>
    %150 = tpu.matmul %146, %143, %cst_50 {dimension_numbers = #tpu.dot_dimension_numbers<[1], [0], [0], [1], [0, 0, 1, 1], [], []>} : vector<32x32xbf16>, vector<32x32xbf16>, vector<32x32xf32> -> vector<32x32xf32>
    %151 = arith.addf %149, %150 : vector<32x32xf32>
    %152 = vector.extract_strided_slice %145 {offsets = [0, 0], sizes = [1, 32], strides = [1, 1]} : vector<8x32xf32> to vector<1x32xf32>
    %153 = vector.broadcast %152 : vector<1x32xf32> to vector<32x32xf32>
    %154 = arith.addf %151, %153 : vector<32x32xf32>
    %cst_51 = arith.constant 0.000000e+00 : f32
    %155 = vector.broadcast %cst_51 : f32 to vector<32x32xf32>
    %156 = arith.maximumf %154, %155 : vector<32x32xf32>
    %cst_52 = arith.constant dense<0.000000e+00> : vector<32xf32>
    %157 = vector.multi_reduction <add>, %156, %cst_52 [0] : vector<32x32xf32> to vector<32xf32>
    %158 = vector.shape_cast %157 : vector<32xf32> to vector<1x32xf32>
    %cst_53 = arith.constant 3.125000e-02 : f32
    %159 = vector.broadcast %cst_53 : f32 to vector<1x32xf32>
    %160 = arith.mulf %158, %159 : vector<1x32xf32>
    %161 = arith.mulf %156, %156 : vector<32x32xf32>
    %cst_54 = arith.constant dense<0.000000e+00> : vector<32xf32>
    %162 = vector.multi_reduction <add>, %161, %cst_54 [0] : vector<32x32xf32> to vector<32xf32>
    %163 = vector.shape_cast %162 : vector<32xf32> to vector<1x32xf32>
    %cst_55 = arith.constant 3.125000e-02 : f32
    %164 = vector.broadcast %cst_55 : f32 to vector<1x32xf32>
    %165 = arith.mulf %163, %164 : vector<1x32xf32>
    %166 = arith.mulf %160, %160 : vector<1x32xf32>
    %167 = arith.subf %165, %166 : vector<1x32xf32>
    %168 = vector.extract_strided_slice %145 {offsets = [1, 0], sizes = [1, 32], strides = [1, 1]} : vector<8x32xf32> to vector<1x32xf32>
    %cst_56 = arith.constant 9.99999974E-6 : f32
    %169 = vector.broadcast %cst_56 : f32 to vector<1x32xf32>
    %170 = arith.addf %167, %169 : vector<1x32xf32>
    %171 = math.rsqrt %170 : vector<1x32xf32>
    %172 = arith.mulf %168, %171 : vector<1x32xf32>
    %173 = vector.broadcast %172 : vector<1x32xf32> to vector<32x32xf32>
    %174 = arith.mulf %156, %173 : vector<32x32xf32>
    %175 = vector.extract_strided_slice %145 {offsets = [2, 0], sizes = [1, 32], strides = [1, 1]} : vector<8x32xf32> to vector<1x32xf32>
    %176 = arith.mulf %160, %172 : vector<1x32xf32>
    %177 = arith.subf %175, %176 : vector<1x32xf32>
    %178 = vector.broadcast %177 : vector<1x32xf32> to vector<32x32xf32>
    %179 = arith.addf %174, %178 : vector<32x32xf32>
    %180 = vector.extract_strided_slice %145 {offsets = [3, 0], sizes = [1, 32], strides = [1, 1]} : vector<8x32xf32> to vector<1x32xf32>
    %181 = vector.extract_strided_slice %145 {offsets = [4, 0], sizes = [1, 32], strides = [1, 1]} : vector<8x32xf32> to vector<1x32xf32>
    %182 = vector.extract_strided_slice %145 {offsets = [5, 0], sizes = [1, 32], strides = [1, 1]} : vector<8x32xf32> to vector<1x32xf32>
    %183 = vector.extract_strided_slice %179 {offsets = [0, 0], sizes = [16, 32], strides = [1, 1]} : vector<32x32xf32> to vector<16x32xf32>
    %184 = vector.extract_strided_slice %179 {offsets = [16, 0], sizes = [16, 32], strides = [1, 1]} : vector<32x32xf32> to vector<16x32xf32>
    %185 = arith.addf %183, %184 : vector<16x32xf32>
    %cst_57 = arith.constant 5.000000e-01 : f32
    %186 = vector.broadcast %cst_57 : f32 to vector<16x32xf32>
    %187 = arith.mulf %185, %186 : vector<16x32xf32>
    %188 = vector.broadcast %182 : vector<1x32xf32> to vector<16x32xf32>
    %189 = arith.mulf %187, %188 : vector<16x32xf32>
    %190 = arith.subf %183, %189 : vector<16x32xf32>
    %191 = arith.subf %184, %189 : vector<16x32xf32>
    %192 = arith.mulf %190, %190 : vector<16x32xf32>
    %193 = arith.mulf %191, %191 : vector<16x32xf32>
    %194 = arith.addf %192, %193 : vector<16x32xf32>
    %cst_58 = arith.constant 5.000000e-01 : f32
    %195 = vector.broadcast %cst_58 : f32 to vector<16x32xf32>
    %196 = arith.mulf %194, %195 : vector<16x32xf32>
    %cst_59 = arith.constant 9.99999974E-6 : f32
    %197 = vector.broadcast %cst_59 : f32 to vector<16x32xf32>
    %198 = arith.addf %196, %197 : vector<16x32xf32>
    %199 = math.rsqrt %198 : vector<16x32xf32>
    %200 = vector.broadcast %180 : vector<1x32xf32> to vector<16x32xf32>
    %201 = arith.mulf %200, %199 : vector<16x32xf32>
    %202 = arith.mulf %190, %201 : vector<16x32xf32>
    %203 = vector.broadcast %181 : vector<1x32xf32> to vector<16x32xf32>
    %204 = arith.addf %202, %203 : vector<16x32xf32>
    %205 = arith.mulf %191, %201 : vector<16x32xf32>
    %206 = vector.broadcast %181 : vector<1x32xf32> to vector<16x32xf32>
    %207 = arith.addf %205, %206 : vector<16x32xf32>
    %208 = tpu.concatenate %204, %207 in 0 : vector<16x32xf32>, vector<16x32xf32> -> vector<32x32xf32>
    %c0_60 = arith.constant 0 : index
    %c0_61 = arith.constant 0 : index
    %209 = vector.load %arg4[%c0_60, %c0_61] : memref<32x32xf32, #tpu.memory_space<vmem>>, vector<32x32xf32>
    tpu.vector_store %arg4[%c0_60, %c0_61], %208 {strides = array<i32>} : memref<32x32xf32, #tpu.memory_space<vmem>>, vector<32x32xf32>,
    return
  }
}

</mosaic_0001>

<llo_original>
// kernel: gnn_forward.1
$region0: #{gnn_forward.1}
  #allocation0 [shape = 'u32[]', space=smem, size = 0x4, offset = 0x4, fixed_abs, tag = 'smem constant byte address 0x4 - core index']
  #allocation1 [shape = 'u32[72,128]{1,0:T(1,128)}', space=vmem, size = 0x9000, scoped, tag = 'internal scratch']
  %s0 = inlined_call_operand.vmem [shape: bf16[32,32], index: 0, kind: input, shape index: {}]
  %s1 = inlined_call_operand.vmem [shape: f32[32,32], index: 1, kind: input, shape index: {}]
  %s2 = inlined_call_operand.vmem [shape: bf16[6,32,32], index: 2, kind: input, shape index: {}]
  %s3 = inlined_call_operand.vmem [shape: f32[3,8,32], index: 3, kind: input, shape index: {}]
  %s4 = inlined_call_operand.hbm [shape: f32[32,32], index: 4, kind: output, shape index: {}]
  %s5 = sld [smem:[#allocation0]]
  $region26: #{gnn_forward.1} parent=0
    _
  %s7 = ssub.s32 1, %s5
  %s8 = scalar_select 0, %s7, %s5
  $region1: #{gnn_forward.1} parent=0
    #allocation2 [shape = 'u8[16384]{0}', space=vmem, size = 0x4000, scoped, tag = 'output window, operand 0, single buffered']
    #allocation3 [shape = 's32[1]{0}', space=sflag, size = 0x4, scoped, tag = 'scoped memory for gnn_forward.1']
    %9 = vsyncpa [#allocation3], 0
    // Predicated region
    $region2: #{gnn_forward.1} parent=1 // pred_check
      _
    $region3: #{gnn_forward.1} parent=1 // pred_check_branch
      %11 = sbr.rel (0) target = $region5
    $region4: #{gnn_forward.1} parent=1 // pred_region
      _
    $region5: #{gnn_forward.1} parent=1 // pred_fallthru
      _
    // Predicated region
    $region6: #{gnn_forward.1} parent=1 // pred_check
      _
    $region7: #{gnn_forward.1} parent=1 // pred_check_branch
      %13 = sbr.rel (0) target = $region9
    $region8: #{gnn_forward.1} parent=1 // pred_region
      _
    $region9: #{gnn_forward.1} parent=1 // pred_fallthru
      _
    // Predicated region
    $region10: #{gnn_forward.1} parent=1 // pred_check
      _
    $region11: #{gnn_forward.1} parent=1 // pred_check_branch
      %15 = sbr.rel (0) target = $region13
    $region12: #{gnn_forward.1} parent=1 // pred_region
      _
    $region13: #{gnn_forward.1} parent=1 // pred_fallthru
      _
    // Predicated region
    $region14: #{gnn_forward.1} parent=1 // pred_check
      _
    $region15: #{gnn_forward.1} parent=1 // pred_check_branch
      %17 = sbr.rel (0) target = $region17
    $region16: #{gnn_forward.1} parent=1 // pred_region
      _
    $region17: #{gnn_forward.1} parent=1 // pred_fallthru
      _
    %v19 = vld [vmem:[%s0] sm:$0xf]
    %v20 = vld [vmem:[%s0 + $0x4] sm:$0xf]
    %v21 = vld [vmem:[%s0 + $0x8] sm:$0xf]
    %v22 = vld [vmem:[%s0 + $0xc] sm:$0xf]
    %v23 = vld [vmem:[%s1] sm:$0xff]
    %v24 = vld [vmem:[%s1 + $0x8] sm:$0xff]
    %v25 = vld [vmem:[%s1 + $0x10] sm:$0xff]
    %v26 = vld [vmem:[%s1 + $0x18] sm:$0xff]
    %v27 = vld [vmem:[%s2] sm:$0xf]
    %v28 = vld [vmem:[%s2 + $0x4] sm:$0xf]
    %v29 = vld [vmem:[%s2 + $0x8] sm:$0xf]
    %v30 = vld [vmem:[%s2 + $0xc] sm:$0xf]
    %s31 = scalar_lea.vmem %s2, 16
    %v32 = vld [vmem:[%s31] sm:$0xf]
    %v33 = vld [vmem:[%s31 + $0x4] sm:$0xf]
    %v34 = vld [vmem:[%s31 + $0x8] sm:$0xf]
    %v35 = vld [vmem:[%s31 + $0xc] sm:$0xf]
    %v36 = vld [vmem:[%s3] sm:$0xff]
    %v37 = vpack.c.bf16 %v24, %v23
    %v38 = vpack.c.bf16 %v26, %v25
    %v43 = vunpack.c.l.b16 %v19
    %v44 = vunpack.c.l.b16 %v20
    %v45 = vunpack.c.l.b16 %v21
    %v46 = vunpack.c.l.b16 %v22
    %v47 = vpack.c.b16 %v44, %v43
    %v48 = vpack.c.b16 %v46, %v45
    %vm49 = vcmask 261120
    %v51 = vsel %vm49, %v47, 0
    %v54 = vsel %vm49, %v48, 0
    %56 = vmatpush.bf16.msra.mxu0 0
    %57 = vmatpush.bf16.msra.mxu0 0
    %58 = vmatpush.bf16.msra.mxu0 0
    %59 = vmatpush.bf16.msra.mxu0 0
    %60 = vmatpush.bf16.msra.mxu0 0
    %61 = vmatpush.bf16.msra.mxu0 0
    %62 = vmatpush.bf16.msra.mxu0 %v38
    %63 = vmatpush.bf16.msra.mxu0 %v37
    %64 = vmatmul.bf16.gmra.mxu0 %v51
    %v65 = vpop.f32.mrf.mxu0
    %v66 = vadd.f32 0.0, %v65
    %v67 = vpop.f32.mrf.mxu0
    %v68 = vadd.f32 0.0, %v67
    %69 = vmatmul.bf16.gmra.mxu0 %v54
    %v70 = vpop.f32.mrf.mxu0
    %v71 = vadd.f32 0.0, %v70
    %v72 = vpop.f32.mrf.mxu0
    %v73 = vadd.f32 0.0, %v72
    %74 = vdwg.mxu0
    %v75 = vpack.c.bf16 %v68, %v66
    %v76 = vpack.c.bf16 %v73, %v71
    %v81 = vunpack.c.l.b16 %v32
    %v82 = vunpack.c.l.b16 %v33
    %v83 = vunpack.c.l.b16 %v34
    %v84 = vunpack.c.l.b16 %v35
    %v85 = vpack.c.b16 %v82, %v81
    %v86 = vpack.c.b16 %v84, %v83
    %v90 = vsel %vm49, %v37, 0
    %v93 = vsel %vm49, %v38, 0
    %95 = vmatpush.bf16.msra.mxu0 0
    %96 = vmatpush.bf16.msra.mxu0 0
    %97 = vmatpush.bf16.msra.mxu0 0
    %98 = vmatpush.bf16.msra.mxu0 0
    %99 = vmatpush.bf16.msra.mxu0 0
    %100 = vmatpush.bf16.msra.mxu0 0
    %101 = vmatpush.bf16.msra.mxu0 %v86
    %102 = vmatpush.bf16.msra.mxu0 %v85
    %103 = vmatmul.bf16.gmra.mxu0 %v90
    %v104 = vpop.f32.mrf.mxu0
    %v105 = vadd.f32 0.0, %v104
    %v106 = vpop.f32.mrf.mxu0
    %v107 = vadd.f32 0.0, %v106
    %108 = vmatmul.bf16.gmra.mxu0 %v93
    %v109 = vpop.f32.mrf.mxu0
    %v110 = vadd.f32 0.0, %v109
    %v111 = vpop.f32.mrf.mxu0
    %v112 = vadd.f32 0.0, %v111
    %113 = vdwg.mxu0
    %v118 = vunpack.c.l.b16 %v27
    %v119 = vunpack.c.l.b16 %v28
    %v120 = vunpack.c.l.b16 %v29
    %v121 = vunpack.c.l.b16 %v30
    %v122 = vpack.c.b16 %v119, %v118
    %v123 = vpack.c.b16 %v121, %v120
    %v127 = vsel %vm49, %v75, 0
    %v130 = vsel %vm49, %v76, 0
    %132 = vmatpush.bf16.msra.mxu0 0
    %133 = vmatpush.bf16.msra.mxu0 0
    %134 = vmatpush.bf16.msra.mxu0 0
    %135 = vmatpush.bf16.msra.mxu0 0
    %136 = vmatpush.bf16.msra.mxu0 0
    %137 = vmatpush.bf16.msra.mxu0 0
    %138 = vmatpush.bf16.msra.mxu0 %v123
    %139 = vmatpush.bf16.msra.mxu0 %v122
    %140 = vmatmul.bf16.gmra.mxu0 %v127
    %v141 = vpop.f32.mrf.mxu0
    %v142 = vadd.f32 %v105, %v141
    %v143 = vpop.f32.mrf.mxu0
    %v144 = vadd.f32 %v107, %v143
    %145 = vmatmul.bf16.gmra.mxu0 %v130
    %v146 = vpop.f32.mrf.mxu0
    %v147 = vadd.f32 %v110, %v146
    %v148 = vpop.f32.mrf.mxu0
    %v149 = vadd.f32 %v112, %v148
    %150 = vdwg.mxu0
    %v151 = vperm.slane %v36, 0
    %v152 = vadd.f32 %v142, %v151
    %v153 = vadd.f32 %v144, %v151
    %v154 = vadd.f32 %v147, %v151
    %v155 = vadd.f32 %v149, %v151
    %v156 = vmax.f32 %v152, 0.0
    %v157 = vmax.f32 %v153, 0.0
    %v158 = vmax.f32 %v154, 0.0
    %v159 = vmax.f32 %v155, 0.0
    %v160 = vsel %vm49, %v156, 0.0
    %v161 = vsel %vm49, %v157, 0.0
    %v162 = vadd.f32 %v160, %v161
    %v163 = vsel %vm49, %v158, 0.0
    %v164 = vadd.f32 %v162, %v163
    %v165 = vsel %vm49, %v159, 0.0
    %v166 = vadd.f32 %v164, %v165
    %v167 = vrot.slane %v166, 4
    %v168 = vadd.f32 %v166, %v167
    %v169 = vrot.slane %v168, 2
    %v170 = vadd.f32 %v168, %v169
    %v171 = vrot.slane %v170, 1
    %v172 = vadd.f32 %v170, %v171
    %v173 = vmul.f32 %v172, 0.03125
    %v174 = vmul.f32 %v156, %v156
    %v175 = vmul.f32 %v157, %v157
    %v176 = vmul.f32 %v158, %v158
    %v177 = vmul.f32 %v159, %v159
    %v178 = vsel %vm49, %v174, 0.0
    %v179 = vsel %vm49, %v175, 0.0
    %v180 = vadd.f32 %v178, %v179
    %v181 = vsel %vm49, %v176, 0.0
    %v182 = vadd.f32 %v180, %v181
    %v183 = vsel %vm49, %v177, 0.0
    %v184 = vadd.f32 %v182, %v183
    %v185 = vrot.slane %v184, 4
    %v186 = vadd.f32 %v184, %v185
    %v187 = vrot.slane %v186, 2
    %v188 = vadd.f32 %v186, %v187
    %v189 = vrot.slane %v188, 1
    %v190 = vadd.f32 %v188, %v189
    %v191 = vmul.f32 %v190, 0.03125
    %v192 = vmul.f32 %v173, %v173
    %v193 = vsub.f32 %v191, %v192
    %v194 = vadd.f32 %v193, 1e-05
    %v195 = vrsqrt.pop %v194
    %v196 = vmul.f32 %v195, %v194
    %v197 = vmul.f32 %v196, %v195
    %v198 = vmul.f32 0.5, %v197
    %v199 = vsub.f32 1.5, %v198
    %v200 = vmul.f32 %v195, %v199
    %vm201 = vweird.f32 %v194
    %vm202 = vweird.f32 %v195
    %vm203 = vmor %vm201, %vm202
    %v204 = vsel %vm203, %v195, %v200
    %v205 = vmul.f32 %v36, %v204
    %v206 = vperm.slane %v205, 1
    %v207 = vmul.f32 %v156, %v206
    %v208 = vmul.f32 %v157, %v206
    %v209 = vmul.f32 %v158, %v206
    %v210 = vmul.f32 %v159, %v206
    %v211 = vmul.f32 %v173, %v205
    %v213 = vrot.slane %v211, 7
    %v215 = vsub.f32 %v36, %v213
    %v216 = vperm.slane %v215, 2
    %v217 = vadd.f32 %v207, %v216
    %v218 = vadd.f32 %v208, %v216
    %v219 = vadd.f32 %v209, %v216
    %v220 = vadd.f32 %v210, %v216
    %v221 = vadd.f32 %v217, %v219
    %v222 = vadd.f32 %v218, %v220
    %v223 = vmul.f32 %v221, 0.5
    %v224 = vmul.f32 %v222, 0.5
    %v225 = vperm.slane %v36, 5
    %v226 = vmul.f32 %v223, %v225
    %v227 = vmul.f32 %v224, %v225
    %v228 = vsub.f32 %v217, %v226
    %v229 = vsub.f32 %v218, %v227
    %v230 = vsub.f32 %v219, %v226
    %v231 = vsub.f32 %v220, %v227
    %v232 = vmul.f32 %v228, %v228
    %v233 = vmul.f32 %v229, %v229
    %v234 = vmul.f32 %v230, %v230
    %v235 = vmul.f32 %v231, %v231
    %v236 = vadd.f32 %v232, %v234
    %v237 = vadd.f32 %v233, %v235
    %v238 = vmul.f32 %v236, 0.5
    %v239 = vmul.f32 %v237, 0.5
    %v240 = vadd.f32 %v238, 1e-05
    %v241 = vadd.f32 %v239, 1e-05
    %v242 = vrsqrt.pop %v240
    %v243 = vmul.f32 %v242, %v240
    %v244 = vmul.f32 %v243, %v242
    %v245 = vmul.f32 0.5, %v244
    %v246 = vsub.f32 1.5, %v245
    %v247 = vmul.f32 %v242, %v246
    %vm248 = vweird.f32 %v240
    %vm249 = vweird.f32 %v242
    %vm250 = vmor %vm248, %vm249
    %v251 = vsel %vm250, %v242, %v247
    %v252 = vrsqrt.pop %v241
    %v253 = vmul.f32 %v252, %v241
    %v254 = vmul.f32 %v253, %v252
    %v255 = vmul.f32 0.5, %v254
    %v256 = vsub.f32 1.5, %v255
    %v257 = vmul.f32 %v252, %v256
    %vm258 = vweird.f32 %v241
    %vm259 = vweird.f32 %v252
    %vm260 = vmor %vm258, %vm259
    %v261 = vsel %vm260, %v252, %v257
    %v262 = vperm.slane %v36, 3
    %v263 = vmul.f32 %v262, %v251
    %v264 = vmul.f32 %v262, %v261
    %v265 = vmul.f32 %v228, %v263
    %v266 = vmul.f32 %v229, %v264
    %v267 = vperm.slane %v36, 4
    %v268 = vadd.f32 %v265, %v267
    %v269 = vadd.f32 %v266, %v267
    %v270 = vmul.f32 %v230, %v263
    %v271 = vmul.f32 %v231, %v264
    %v272 = vadd.f32 %v270, %v267
    %v273 = vadd.f32 %v271, %v267
    %s274 = scalar_lea.vmem %s2, 32
    %v275 = vld [vmem:[%s274] sm:$0xf]
    %v276 = vld [vmem:[%s274 + $0x4] sm:$0xf]
    %v277 = vld [vmem:[%s274 + $0x8] sm:$0xf]
    %v278 = vld [vmem:[%s274 + $0xc] sm:$0xf]
    %s279 = scalar_lea.vmem %s2, 48
    %v280 = vld [vmem:[%s279] sm:$0xf]
    %v281 = vld [vmem:[%s279 + $0x4] sm:$0xf]
    %v282 = vld [vmem:[%s279 + $0x8] sm:$0xf]
    %v283 = vld [vmem:[%s279 + $0xc] sm:$0xf]
    %s284 = scalar_lea.vmem %s3, 8
    %v285 = vld [vmem:[%s284] sm:$0xff]
    %v286 = vpack.c.bf16 %v269, %v268
    %v287 = vpack.c.bf16 %v273, %v272
    %288 = vmatpush.bf16.msra.mxu0 0
    %289 = vmatpush.bf16.msra.mxu0 0
    %290 = vmatpush.bf16.msra.mxu0 0
    %291 = vmatpush.bf16.msra.mxu0 0
    %292 = vmatpush.bf16.msra.mxu0 0
    %293 = vmatpush.bf16.msra.mxu0 0
    %294 = vmatpush.bf16.msra.mxu0 %v287
    %295 = vmatpush.bf16.msra.mxu0 %v286
    %296 = vmatmul.bf16.gmra.mxu0 %v51
    %v297 = vpop.f32.mrf.mxu0
    %v298 = vadd.f32 0.0, %v297
    %v299 = vpop.f32.mrf.mxu0
    %v300 = vadd.f32 0.0, %v299
    %301 = vmatmul.bf16.gmra.mxu0 %v54
    %v302 = vpop.f32.mrf.mxu0
    %v303 = vadd.f32 0.0, %v302
    %v304 = vpop.f32.mrf.mxu0
    %v305 = vadd.f32 0.0, %v304
    %306 = vdwg.mxu0
    %v307 = vpack.c.bf16 %v300, %v298
    %v308 = vpack.c.bf16 %v305, %v303
    %v313 = vunpack.c.l.b16 %v280
    %v314 = vunpack.c.l.b16 %v281
    %v315 = vunpack.c.l.b16 %v282
    %v316 = vunpack.c.l.b16 %v283
    %v317 = vpack.c.b16 %v314, %v313
    %v318 = vpack.c.b16 %v316, %v315
    %v322 = vsel %vm49, %v286, 0
    %v325 = vsel %vm49, %v287, 0
    %327 = vmatpush.bf16.msra.mxu0 0
    %328 = vmatpush.bf16.msra.mxu0 0
    %329 = vmatpush.bf16.msra.mxu0 0
    %330 = vmatpush.bf16.msra.mxu0 0
    %331 = vmatpush.bf16.msra.mxu0 0
    %332 = vmatpush.bf16.msra.mxu0 0
    %333 = vmatpush.bf16.msra.mxu0 %v318
    %334 = vmatpush.bf16.msra.mxu0 %v317
    %335 = vmatmul.bf16.gmra.mxu0 %v322
    %v336 = vpop.f32.mrf.mxu0
    %v337 = vadd.f32 0.0, %v336
    %v338 = vpop.f32.mrf.mxu0
    %v339 = vadd.f32 0.0, %v338
    %340 = vmatmul.bf16.gmra.mxu0 %v325
    %v341 = vpop.f32.mrf.mxu0
    %v342 = vadd.f32 0.0, %v341
    %v343 = vpop.f32.mrf.mxu0
    %v344 = vadd.f32 0.0, %v343
    %345 = vdwg.mxu0
    %v350 = vunpack.c.l.b16 %v275
    %v351 = vunpack.c.l.b16 %v276
    %v352 = vunpack.c.l.b16 %v277
    %v353 = vunpack.c.l.b16 %v278
    %v354 = vpack.c.b16 %v351, %v350
    %v355 = vpack.c.b16 %v353, %v352
    %v359 = vsel %vm49, %v307, 0
    %v362 = vsel %vm49, %v308, 0
    %364 = vmatpush.bf16.msra.mxu0 0
    %365 = vmatpush.bf16.msra.mxu0 0
    %366 = vmatpush.bf16.msra.mxu0 0
    %367 = vmatpush.bf16.msra.mxu0 0
    %368 = vmatpush.bf16.msra.mxu0 0
    %369 = vmatpush.bf16.msra.mxu0 0
    %370 = vmatpush.bf16.msra.mxu0 %v355
    %371 = vmatpush.bf16.msra.mxu0 %v354
    %372 = vmatmul.bf16.gmra.mxu0 %v359
    %v373 = vpop.f32.mrf.mxu0
    %v374 = vadd.f32 %v337, %v373
    %v375 = vpop.f32.mrf.mxu0
    %v376 = vadd.f32 %v339, %v375
    %377 = vmatmul.bf16.gmra.mxu0 %v362
    %v378 = vpop.f32.mrf.mxu0
    %v379 = vadd.f32 %v342, %v378
    %v380 = vpop.f32.mrf.mxu0
    %v381 = vadd.f32 %v344, %v380
    %382 = vdwg.mxu0
    %v383 = vperm.slane %v285, 0
    %v384 = vadd.f32 %v374, %v383
    %v385 = vadd.f32 %v376, %v383
    %v386 = vadd.f32 %v379, %v383
    %v387 = vadd.f32 %v381, %v383
    %v388 = vmax.f32 %v384, 0.0
    %v389 = vmax.f32 %v385, 0.0
    %v390 = vmax.f32 %v386, 0.0
    %v391 = vmax.f32 %v387, 0.0
    %v392 = vsel %vm49, %v388, 0.0
    %v393 = vsel %vm49, %v389, 0.0
    %v394 = vadd.f32 %v392, %v393
    %v395 = vsel %vm49, %v390, 0.0
    %v396 = vadd.f32 %v394, %v395
    %v397 = vsel %vm49, %v391, 0.0
    %v398 = vadd.f32 %v396, %v397
    %v399 = vrot.slane %v398, 4
    %v400 = vadd.f32 %v398, %v399
    %v401 = vrot.slane %v400, 2
    %v402 = vadd.f32 %v400, %v401
    %v403 = vrot.slane %v402, 1
    %v404 = vadd.f32 %v402, %v403
    %v405 = vmul.f32 %v404, 0.03125
    %v406 = vmul.f32 %v388, %v388
    %v407 = vmul.f32 %v389, %v389
    %v408 = vmul.f32 %v390, %v390
    %v409 = vmul.f32 %v391, %v391
    %v410 = vsel %vm49, %v406, 0.0
    %v411 = vsel %vm49, %v407, 0.0
    %v412 = vadd.f32 %v410, %v411
    %v413 = vsel %vm49, %v408, 0.0
    %v414 = vadd.f32 %v412, %v413
    %v415 = vsel %vm49, %v409, 0.0
    %v416 = vadd.f32 %v414, %v415
    %v417 = vrot.slane %v416, 4
    %v418 = vadd.f32 %v416, %v417
    %v419 = vrot.slane %v418, 2
    %v420 = vadd.f32 %v418, %v419
    %v421 = vrot.slane %v420, 1
    %v422 = vadd.f32 %v420, %v421
    %v423 = vmul.f32 %v422, 0.03125
    %v424 = vmul.f32 %v405, %v405
    %v425 = vsub.f32 %v423, %v424
    %v426 = vadd.f32 %v425, 1e-05
    %v427 = vrsqrt.pop %v426
    %v428 = vmul.f32 %v427, %v426
    %v429 = vmul.f32 %v428, %v427
    %v430 = vmul.f32 0.5, %v429
    %v431 = vsub.f32 1.5, %v430
    %v432 = vmul.f32 %v427, %v431
    %vm433 = vweird.f32 %v426
    %vm434 = vweird.f32 %v427
    %vm435 = vmor %vm433, %vm434
    %v436 = vsel %vm435, %v427, %v432
    %v437 = vmul.f32 %v285, %v436
    %v438 = vperm.slane %v437, 1
    %v439 = vmul.f32 %v388, %v438
    %v440 = vmul.f32 %v389, %v438
    %v441 = vmul.f32 %v390, %v438
    %v442 = vmul.f32 %v391, %v438
    %v443 = vmul.f32 %v405, %v437
    %v445 = vrot.slane %v443, 7
    %v447 = vsub.f32 %v285, %v445
    %v448 = vperm.slane %v447, 2
    %v449 = vadd.f32 %v439, %v448
    %v450 = vadd.f32 %v440, %v448
    %v451 = vadd.f32 %v441, %v448
    %v452 = vadd.f32 %v442, %v448
    %v453 = vadd.f32 %v449, %v451
    %v454 = vadd.f32 %v450, %v452
    %v455 = vmul.f32 %v453, 0.5
    %v456 = vmul.f32 %v454, 0.5
    %v457 = vperm.slane %v285, 5
    %v458 = vmul.f32 %v455, %v457
    %v459 = vmul.f32 %v456, %v457
    %v460 = vsub.f32 %v449, %v458
    %v461 = vsub.f32 %v450, %v459
    %v462 = vsub.f32 %v451, %v458
    %v463 = vsub.f32 %v452, %v459
    %v464 = vmul.f32 %v460, %v460
    %v465 = vmul.f32 %v461, %v461
    %v466 = vmul.f32 %v462, %v462
    %v467 = vmul.f32 %v463, %v463
    %v468 = vadd.f32 %v464, %v466
    %v469 = vadd.f32 %v465, %v467
    %v470 = vmul.f32 %v468, 0.5
    %v471 = vmul.f32 %v469, 0.5
    %v472 = vadd.f32 %v470, 1e-05
    %v473 = vadd.f32 %v471, 1e-05
    %v474 = vrsqrt.pop %v472
    %v475 = vmul.f32 %v474, %v472
    %v476 = vmul.f32 %v475, %v474
    %v477 = vmul.f32 0.5, %v476
    %v478 = vsub.f32 1.5, %v477
    %v479 = vmul.f32 %v474, %v478
    %vm480 = vweird.f32 %v472
    %vm481 = vweird.f32 %v474
    %vm482 = vmor %vm480, %vm481
    %v483 = vsel %vm482, %v474, %v479
    %v484 = vrsqrt.pop %v473
    %v485 = vmul.f32 %v484, %v473
    %v486 = vmul.f32 %v485, %v484
    %v487 = vmul.f32 0.5, %v486
    %v488 = vsub.f32 1.5, %v487
    %v489 = vmul.f32 %v484, %v488
    %vm490 = vweird.f32 %v473
    %vm491 = vweird.f32 %v484
    %vm492 = vmor %vm490, %vm491
    %v493 = vsel %vm492, %v484, %v489
    %v494 = vperm.slane %v285, 3
    %v495 = vmul.f32 %v494, %v483
    %v496 = vmul.f32 %v494, %v493
    %v497 = vmul.f32 %v460, %v495
    %v498 = vmul.f32 %v461, %v496
    %v499 = vperm.slane %v285, 4
    %v500 = vadd.f32 %v497, %v499
    %v501 = vadd.f32 %v498, %v499
    %v502 = vmul.f32 %v462, %v495
    %v503 = vmul.f32 %v463, %v496
    %v504 = vadd.f32 %v502, %v499
    %v505 = vadd.f32 %v503, %v499
    %s506 = scalar_lea.vmem %s2, 64
    %v507 = vld [vmem:[%s506] sm:$0xf]
    %v508 = vld [vmem:[%s506 + $0x4] sm:$0xf]
    %v509 = vld [vmem:[%s506 + $0x8] sm:$0xf]
    %v510 = vld [vmem:[%s506 + $0xc] sm:$0xf]
    %s511 = scalar_lea.vmem %s2, 80
    %v512 = vld [vmem:[%s511] sm:$0xf]
    %v513 = vld [vmem:[%s511 + $0x4] sm:$0xf]
    %v514 = vld [vmem:[%s511 + $0x8] sm:$0xf]
    %v515 = vld [vmem:[%s511 + $0xc] sm:$0xf]
    %s516 = scalar_lea.vmem %s3, 16
    %v517 = vld [vmem:[%s516] sm:$0xff]
    %v518 = vpack.c.bf16 %v501, %v500
    %v519 = vpack.c.bf16 %v505, %v504
    %520 = vmatpush.bf16.msra.mxu0 0
    %521 = vmatpush.bf16.msra.mxu0 0
    %522 = vmatpush.bf16.msra.mxu0 0
    %523 = vmatpush.bf16.msra.mxu0 0
    %524 = vmatpush.bf16.msra.mxu0 0
    %525 = vmatpush.bf16.msra.mxu0 0
    %526 = vmatpush.bf16.msra.mxu0 %v519
    %527 = vmatpush.bf16.msra.mxu0 %v518
    %528 = vmatmul.bf16.gmra.mxu0 %v51
    %v529 = vpop.f32.mrf.mxu0
    %v530 = vadd.f32 0.0, %v529
    %v531 = vpop.f32.mrf.mxu0
    %v532 = vadd.f32 0.0, %v531
    %533 = vmatmul.bf16.gmra.mxu0 %v54
    %v534 = vpop.f32.mrf.mxu0
    %v535 = vadd.f32 0.0, %v534
    %v536 = vpop.f32.mrf.mxu0
    %v537 = vadd.f32 0.0, %v536
    %538 = vdwg.mxu0
    %v539 = vpack.c.bf16 %v532, %v530
    %v540 = vpack.c.bf16 %v537, %v535
    %v545 = vunpack.c.l.b16 %v512
    %v546 = vunpack.c.l.b16 %v513
    %v547 = vunpack.c.l.b16 %v514
    %v548 = vunpack.c.l.b16 %v515
    %v549 = vpack.c.b16 %v546, %v545
    %v550 = vpack.c.b16 %v548, %v547
    %v554 = vsel %vm49, %v518, 0
    %v557 = vsel %vm49, %v519, 0
    %559 = vmatpush.bf16.msra.mxu0 0
    %560 = vmatpush.bf16.msra.mxu0 0
    %561 = vmatpush.bf16.msra.mxu0 0
    %562 = vmatpush.bf16.msra.mxu0 0
    %563 = vmatpush.bf16.msra.mxu0 0
    %564 = vmatpush.bf16.msra.mxu0 0
    %565 = vmatpush.bf16.msra.mxu0 %v550
    %566 = vmatpush.bf16.msra.mxu0 %v549
    %567 = vmatmul.bf16.gmra.mxu0 %v554
    %v568 = vpop.f32.mrf.mxu0
    %v569 = vadd.f32 0.0, %v568
    %v570 = vpop.f32.mrf.mxu0
    %v571 = vadd.f32 0.0, %v570
    %572 = vmatmul.bf16.gmra.mxu0 %v557
    %v573 = vpop.f32.mrf.mxu0
    %v574 = vadd.f32 0.0, %v573
    %v575 = vpop.f32.mrf.mxu0
    %v576 = vadd.f32 0.0, %v575
    %577 = vdwg.mxu0
    %v582 = vunpack.c.l.b16 %v507
    %v583 = vunpack.c.l.b16 %v508
    %v584 = vunpack.c.l.b16 %v509
    %v585 = vunpack.c.l.b16 %v510
    %v586 = vpack.c.b16 %v583, %v582
    %v587 = vpack.c.b16 %v585, %v584
    %v591 = vsel %vm49, %v539, 0
    %v594 = vsel %vm49, %v540, 0
    %596 = vmatpush.bf16.msra.mxu0 0
    %597 = vmatpush.bf16.msra.mxu0 0
    %598 = vmatpush.bf16.msra.mxu0 0
    %599 = vmatpush.bf16.msra.mxu0 0
    %600 = vmatpush.bf16.msra.mxu0 0
    %601 = vmatpush.bf16.msra.mxu0 0
    %602 = vmatpush.bf16.msra.mxu0 %v587
    %603 = vmatpush.bf16.msra.mxu0 %v586
    %604 = vmatmul.bf16.gmra.mxu0 %v591
    %v605 = vpop.f32.mrf.mxu0
    %v606 = vadd.f32 %v569, %v605
    %v607 = vpop.f32.mrf.mxu0
    %v608 = vadd.f32 %v571, %v607
    %609 = vmatmul.bf16.gmra.mxu0 %v594
    %v610 = vpop.f32.mrf.mxu0
    %v611 = vadd.f32 %v574, %v610
    %v612 = vpop.f32.mrf.mxu0
    %v613 = vadd.f32 %v576, %v612
    %614 = vdwg.mxu0
    %v615 = vperm.slane %v517, 0
    %v616 = vadd.f32 %v606, %v615
    %v617 = vadd.f32 %v608, %v615
    %v618 = vadd.f32 %v611, %v615
    %v619 = vadd.f32 %v613, %v615
    %v620 = vmax.f32 %v616, 0.0
    %v621 = vmax.f32 %v617, 0.0
    %v622 = vmax.f32 %v618, 0.0
    %v623 = vmax.f32 %v619, 0.0
    %v624 = vsel %vm49, %v620, 0.0
    %v625 = vsel %vm49, %v621, 0.0
    %v626 = vadd.f32 %v624, %v625
    %v627 = vsel %vm49, %v622, 0.0
    %v628 = vadd.f32 %v626, %v627
    %v629 = vsel %vm49, %v623, 0.0
    %v630 = vadd.f32 %v628, %v629
    %v631 = vrot.slane %v630, 4
    %v632 = vadd.f32 %v630, %v631
    %v633 = vrot.slane %v632, 2
    %v634 = vadd.f32 %v632, %v633
    %v635 = vrot.slane %v634, 1
    %v636 = vadd.f32 %v634, %v635
    %v637 = vmul.f32 %v636, 0.03125
    %v638 = vmul.f32 %v620, %v620
    %v639 = vmul.f32 %v621, %v621
    %v640 = vmul.f32 %v622, %v622
    %v641 = vmul.f32 %v623, %v623
    %v642 = vsel %vm49, %v638, 0.0
    %v643 = vsel %vm49, %v639, 0.0
    %v644 = vadd.f32 %v642, %v643
    %v645 = vsel %vm49, %v640, 0.0
    %v646 = vadd.f32 %v644, %v645
    %v647 = vsel %vm49, %v641, 0.0
    %v648 = vadd.f32 %v646, %v647
    %v649 = vrot.slane %v648, 4
    %v650 = vadd.f32 %v648, %v649
    %v651 = vrot.slane %v650, 2
    %v652 = vadd.f32 %v650, %v651
    %v653 = vrot.slane %v652, 1
    %v654 = vadd.f32 %v652, %v653
    %v655 = vmul.f32 %v654, 0.03125
    %v656 = vmul.f32 %v637, %v637
    %v657 = vsub.f32 %v655, %v656
    %v658 = vadd.f32 %v657, 1e-05
    %v659 = vrsqrt.pop %v658
    %v660 = vmul.f32 %v659, %v658
    %v661 = vmul.f32 %v660, %v659
    %v662 = vmul.f32 0.5, %v661
    %v663 = vsub.f32 1.5, %v662
    %v664 = vmul.f32 %v659, %v663
    %vm665 = vweird.f32 %v658
    %vm666 = vweird.f32 %v659
    %vm667 = vmor %vm665, %vm666
    %v668 = vsel %vm667, %v659, %v664
    %v669 = vmul.f32 %v517, %v668
    %v670 = vperm.slane %v669, 1
    %v671 = vmul.f32 %v620, %v670
    %v672 = vmul.f32 %v621, %v670
    %v673 = vmul.f32 %v622, %v670
    %v674 = vmul.f32 %v623, %v670
    %v675 = vmul.f32 %v637, %v669
    %v677 = vrot.slane %v675, 7
    %v679 = vsub.f32 %v517, %v677
    %v680 = vperm.slane %v679, 2
    %v681 = vadd.f32 %v671, %v680
    %v682 = vadd.f32 %v672, %v680
    %v683 = vadd.f32 %v673, %v680
    %v684 = vadd.f32 %v674, %v680
    %v685 = vadd.f32 %v681, %v683
    %v686 = vadd.f32 %v682, %v684
    %v687 = vmul.f32 %v685, 0.5
    %v688 = vmul.f32 %v686, 0.5
    %v689 = vperm.slane %v517, 5
    %v690 = vmul.f32 %v687, %v689
    %v691 = vmul.f32 %v688, %v689
    %v692 = vsub.f32 %v681, %v690
    %v693 = vsub.f32 %v682, %v691
    %v694 = vsub.f32 %v683, %v690
    %v695 = vsub.f32 %v684, %v691
    %v696 = vmul.f32 %v692, %v692
    %v697 = vmul.f32 %v693, %v693
    %v698 = vmul.f32 %v694, %v694
    %v699 = vmul.f32 %v695, %v695
    %v700 = vadd.f32 %v696, %v698
    %v701 = vadd.f32 %v697, %v699
    %v702 = vmul.f32 %v700, 0.5
    %v703 = vmul.f32 %v701, 0.5
    %v704 = vadd.f32 %v702, 1e-05
    %v705 = vadd.f32 %v703, 1e-05
    %v706 = vrsqrt.pop %v704
    %v707 = vmul.f32 %v706, %v704
    %v708 = vmul.f32 %v707, %v706
    %v709 = vmul.f32 0.5, %v708
    %v710 = vsub.f32 1.5, %v709
    %v711 = vmul.f32 %v706, %v710
    %vm712 = vweird.f32 %v704
    %vm713 = vweird.f32 %v706
    %vm714 = vmor %vm712, %vm713
    %v715 = vsel %vm714, %v706, %v711
    %v716 = vrsqrt.pop %v705
    %v717 = vmul.f32 %v716, %v705
    %v718 = vmul.f32 %v717, %v716
    %v719 = vmul.f32 0.5, %v718
    %v720 = vsub.f32 1.5, %v719
    %v721 = vmul.f32 %v716, %v720
    %vm722 = vweird.f32 %v705
    %vm723 = vweird.f32 %v716
    %vm724 = vmor %vm722, %vm723
    %v725 = vsel %vm724, %v716, %v721
    %v726 = vperm.slane %v517, 3
    %v727 = vmul.f32 %v726, %v715
    %v728 = vmul.f32 %v726, %v725
    %v729 = vmul.f32 %v692, %v727
    %v730 = vmul.f32 %v693, %v728
    %v731 = vperm.slane %v517, 4
    %v732 = vadd.f32 %v729, %v731
    %v733 = vadd.f32 %v730, %v731
    %v734 = vmul.f32 %v694, %v727
    %v735 = vmul.f32 %v695, %v728
    %v736 = vadd.f32 %v734, %v731
    %v737 = vadd.f32 %v735, %v731
    %738 = vst.msk [vmem:[#allocation2] sm:$0xff] %vm49, %v732
    %739 = vst.msk [vmem:[#allocation2 + $0x8] sm:$0xff] %vm49, %v733
    %740 = vst.msk [vmem:[#allocation2 + $0x10] sm:$0xff] %vm49, %v736
    %741 = vst.msk [vmem:[#allocation2 + $0x18] sm:$0xff] %vm49, %v737
    // Predicated region
    $region18: #{gnn_forward.1} parent=1 // pred_check
      _
    $region19: #{gnn_forward.1} parent=1 // pred_check_branch
      %743 = sbr.rel (0) target = $region21
    $region20: #{gnn_forward.1} parent=1 // pred_region
      %745 = vsyncadd [#allocation3], 0
      %s746 = sshll.u32 [#allocation2], 4
      %s747 = int_to_ptr.vmem [resolvable:$true] %s746
      %s748 = sshll.u32 %s4, 4
      %s749 = int_to_ptr.hbm [resolvable:$true] %s748
      %754 = dma.vmem_to_hbm [thread:$0]  %s747, 512, %s749, [#allocation3], 128, 128, 8
    $region21: #{gnn_forward.1} parent=1 // pred_fallthru
      _
    // Predicated region
    $region22: #{gnn_forward.1} parent=1 // pred_check
      _
    $region23: #{gnn_forward.1} parent=1 // pred_check_branch
      %756 = sbr.rel (0) target = $region25
    $region24: #{gnn_forward.1} parent=1 // pred_region
      %758 = dma.done [#allocation3], 512
    $region25: #{gnn_forward.1} parent=1 // pred_fallthru
      _
    %759 = vsyncpa [#allocation3], 1

</llo_original>
